<compile_context>
chip_gen: v7x
topology: tpu7x:2x2x1
jax: 0.10.0
libtpu: 0.0.40
codegen_flags: <defaults>
</compile_context>

<pallas_src>
import functools

import jax
import jax.numpy as jnp
from jax.experimental import pallas as pl
from jax.experimental.pallas import tpu as pltpu


_LANE = 512  # lane-dense block width (multiple of 128 -> unmasked vector stores)


def _sine_kernel(x_ref, o_ref, *, w0):
    # Single f32 internal path: upcast once, sin, downcast once at the store.
    x = x_ref[...].astype(jnp.float32)
    o_ref[...] = jnp.sin(jnp.float32(w0) * x).astype(o_ref.dtype)


def _round_up(v, m):
    return ((v + m - 1) // m) * m


def _chip_profile():
    """Returns (target_block_bytes, vmem_limit_cap_bytes, two_tensorcores)."""
    try:
        info = pltpu.get_tpu_info()
        vmem_cap = int(getattr(info, "vmem_capacity_bytes", 0)) or (64 << 20)
        if vmem_cap <= (64 << 20):
            # v7x-like: 64 MiB VMEM per TC, 2 TensorCores per chip, ~3.2 TB/s HBM.
            return 8 << 20, 56 << 20, True
        # v5e / v6e: 128 MiB physical VMEM, single TensorCore.
        return 16 << 20, 100 << 20, False
    except Exception:
        # Unknown target: conservative settings that are safe on every generation.
        return 8 << 20, 48 << 20, False


def sine(x, w0=1.0):
    """Elementwise sin(w0 * x) computed in a Pallas TPU kernel."""
    orig_shape = x.shape
    in_dtype = x.dtype

    # torch.sin promotes integer/bool inputs to floating point.
    if jnp.issubdtype(in_dtype, jnp.floating):
        out_dtype = in_dtype
    else:
        out_dtype = jnp.float32
        x = x.astype(jnp.float32)

    n = x.size
    if n == 0:
        return jnp.zeros(orig_shape, out_dtype)

    itemsize = jnp.dtype(x.dtype).itemsize
    out_itemsize = jnp.dtype(out_dtype).itemsize
    lane = _LANE

    rows = pl.cdiv(n, lane)
    rows_pad = _round_up(rows, 8)          # sublane alignment for the 2-D view
    total = rows_pad * lane                # <= n + 8*lane - 1

    target_block_bytes, vmem_cap, two_cores = _chip_profile()

    # Row tile sized for ~target_block_bytes per block (multiple of 8 sublanes).
    tr = max(8, (target_block_bytes // (lane * itemsize)) // 8 * 8)
    if two_cores and rows_pad >= 4 * 8:
        # Aim for >= 4 grid steps (>= 2 per TensorCore) so both cores pipeline.
        tr = min(tr, _round_up(pl.cdiv(rows_pad, 4), 8))
    tr = min(tr, rows_pad)

    grid_n = pl.cdiv(rows_pad, tr)
    if two_cores and grid_n > 1 and grid_n % 2 == 1:
        # Prefer an even step count so the two TensorCores get balanced work.
        tr2 = _round_up(pl.cdiv(rows_pad, grid_n + 1), 8)
        if pl.cdiv(rows_pad, tr2) % 2 == 0:
            tr = tr2
            grid_n = pl.cdiv(rows_pad, tr)

    # Only a tiny tail pad (when n is not a multiple of 8*lane); aligned shapes
    # pay no extra HBM copies at all.
    x_flat = x.reshape(-1)
    if total != n:
        x_flat = jnp.pad(x_flat, (0, total - n))
    x2d = x_flat.reshape(rows_pad, lane)

    block_bytes = tr * lane * max(itemsize, out_itemsize)
    # Double-buffered input + output blocks plus slack, within this chip's VMEM.
    vmem_limit = int(min(vmem_cap, max(32 << 20, 4 * block_bytes + (8 << 20))))

    out2d = pl.pallas_call(
        functools.partial(_sine_kernel, w0=float(w0)),
        out_shape=jax.ShapeDtypeStruct((rows_pad, lane), out_dtype),
        grid_spec=pltpu.PrefetchScalarGridSpec(
            num_scalar_prefetch=0,
            grid=(grid_n,),
            in_specs=[pl.BlockSpec((tr, lane), lambda i: (i, 0))],
            out_specs=pl.BlockSpec((tr, lane), lambda i: (i, 0)),
        ),
        compiler_params=pltpu.CompilerParams(
            dimension_semantics=("parallel",),
            vmem_limit_bytes=vmem_limit,
        ),
        cost_estimate=pl.CostEstimate(
            flops=20 * n,          # sin lowers to a ~15-25-op VPU polynomial
            transcendentals=0,     # not an EUP transcendental on TPU
            bytes_accessed=n * itemsize + n * out_itemsize,
        ),
    )(x2d)

    out_flat = out2d.reshape(-1)
    if total != n:
        out_flat = out_flat[:n]
    return out_flat.reshape(orig_shape)


if __name__ == "__main__":
    key = jax.random.PRNGKey(0)
    w0 = 30.0  # SIREN commonly uses w0=30 for the first layer; module default is 1

    # NCHW input consistent with typical usage inside a decoder.
    x = jax.random.normal(key, (2, 4, 16, 16), dtype=jnp.float32)
    y = jax.block_until_ready(sine(x, w0=w0))
    y_ref = jnp.sin(w0 * x)
    assert y.shape == x.shape and y.dtype == x.dtype
    assert jnp.allclose(y, y_ref, atol=1e-5, rtol=1e-5)

    # Exactly-aligned flat size (4096 = 8 * 512): exercises the zero-copy path.
    xa = jax.random.normal(jax.random.PRNGKey(3), (4, 8, 8, 16), dtype=jnp.float32)
    ya = jax.block_until_ready(sine(xa, w0=w0))
    assert ya.shape == xa.shape and ya.dtype == xa.dtype
    assert jnp.allclose(ya, jnp.sin(w0 * xa), atol=1e-5, rtol=1e-5)

    # Ragged shape (exercises the small tail-pad + ragged last block path).
    x2 = jax.random.normal(jax.random.PRNGKey(1), (3, 5, 7), dtype=jnp.float32)
    y2 = jax.block_until_ready(sine(x2, w0=w0))
    assert y2.shape == x2.shape and y2.dtype == x2.dtype
    assert jnp.allclose(y2, jnp.sin(w0 * x2), atol=1e-5, rtol=1e-5)

    # bf16 path (internal f32 compute, single cast on store).
    x3 = jax.random.normal(jax.random.PRNGKey(2), (2, 4, 16, 16), dtype=jnp.bfloat16)
    y3 = jax.block_until_ready(sine(x3, w0=w0))
    y3_ref = jnp.sin(w0 * x3.astype(jnp.float32)).astype(jnp.bfloat16)
    assert y3.shape == x3.shape and y3.dtype == x3.dtype
    assert jnp.allclose(y3.astype(jnp.float32), y3_ref.astype(jnp.float32),
                        atol=2e-2, rtol=2e-2)

    # Integer input: promoted to float32 output (torch.sin semantics).
    x4 = jnp.arange(2 * 4 * 8, dtype=jnp.int32).reshape(2, 4, 8)
    y4 = jax.block_until_ready(sine(x4, w0=1.0))
    assert y4.dtype == jnp.float32 and y4.shape == x4.shape
    assert jnp.allclose(y4, jnp.sin(x4.astype(jnp.float32)), atol=1e-5, rtol=1e-5)

    print("KERNEL_OK")
</pallas_src>

<mosaic_0001>
module attributes {stable_mosaic.version = 11 : i64} {
  func.func @_sine_kernel(%arg0: i32, %arg1: memref<8x512xf32, #tpu.memory_space<vmem>>, %arg2: memref<8x512xf32, #tpu.memory_space<vmem>>) attributes {dimension_semantics = [#tpu.dimension_semantics<parallel>], iteration_bounds = array<i64: 1>, scalar_prefetch = 0 : i64, scratch_operands = 0 : i64, tpu.core_type = #tpu.core_type<tc>, window_params = [{transform_indices = @transform_0, window_bounds = array<i64: 8, 512>}, {transform_indices = @transform_1, window_bounds = array<i64: 8, 512>}]} {
    %c0 = arith.constant 0 : index
    %c0_0 = arith.constant 0 : index
    %0 = vector.load %arg1[%c0, %c0_0] : memref<8x512xf32, #tpu.memory_space<vmem>>, vector<8x512xf32>
    %cst = arith.constant 3.000000e+01 : f32
    %1 = vector.broadcast %cst : f32 to vector<8x512xf32>
    %2 = arith.mulf %1, %0 : vector<8x512xf32>
    %3 = math.sin %2 : vector<8x512xf32>
    %c0_1 = arith.constant 0 : index
    %c0_2 = arith.constant 0 : index
    %4 = vector.load %arg2[%c0_1, %c0_2] : memref<8x512xf32, #tpu.memory_space<vmem>>, vector<8x512xf32>
    tpu.vector_store %arg2[%c0_1, %c0_2], %3 {strides = array<i32>} : memref<8x512xf32, #tpu.memory_space<vmem>>, vector<8x512xf32>,
    return
  }
  func.func @transform_0(%arg0: i32) -> (i32, i32) {
    %c0_i32 = arith.constant 0 : i32
    %c0_i32_0 = arith.constant 0 : i32
    return %arg0, %c0_i32 : i32, i32
  }
  func.func @transform_1(%arg0: i32) -> (i32, i32) {
    %c0_i32 = arith.constant 0 : i32
    %c0_i32_0 = arith.constant 0 : i32
    return %arg0, %c0_i32 : i32, i32
  }
}

</mosaic_0001>

<llo_original>
// kernel: tpu_custom_call.1
$region0: #{tpu_custom_call.1}
  #allocation0 [shape = 'u32[]', space=smem, size = 0x4, offset = 0x4, fixed_abs, tag = 'smem constant byte address 0x4 - core index']
  #allocation1 [shape = 'u32[144,128]{1,0:T(1,128)}', space=vmem, size = 0x12000, scoped, tag = 'internal scratch']
  %s0 = inlined_call_operand.hbm [shape: f32[8,512], index: 0, kind: input, shape index: {}]
  %s1 = inlined_call_operand.hbm [shape: f32[8,512], index: 1, kind: output, shape index: {}]
  %s2 = sld [smem:[#allocation0]]
  $region18: #{tpu_custom_call.1} parent=0
    _
  %s4 = ssub.s32 1, %s2
  %s5 = scalar_select 0, %s4, %s2
  $region1: #{tpu_custom_call.1} parent=0
    #allocation2 [shape = 'u8[16384]{0}', space=vmem, size = 0x4000, scoped, tag = 'input window, operand 0, single buffered']
    #allocation3 [shape = 's32[1]{0}', space=sflag, size = 0x4, scoped, tag = 'scoped memory for tpu_custom_call.1']
    #allocation4 [shape = 's32[1]{0}', space=sflag, size = 0x4, scoped, tag = 'scoped memory for tpu_custom_call.1']
    #allocation5 [shape = 'u8[16384]{0}', space=vmem, size = 0x4000, scoped, tag = 'output window, operand 0, single buffered']
    %6 = vsyncpa [#allocation3], 0
    %7 = vsyncpa [#allocation4], 0
    // Predicated region
    $region2: #{tpu_custom_call.1} parent=1 // pred_check
      _
    $region3: #{tpu_custom_call.1} parent=1 // pred_check_branch
      %9 = sbr.rel (0) target = $region5
    $region4: #{tpu_custom_call.1} parent=1 // pred_region
      %s11 = ssub.s32 512, 512
      %12 = vsyncadd [#allocation3], %s11
      %s14 = sshll.u32 [#allocation2], 4
      %s15 = int_to_ptr.vmem [resolvable:$true] %s14
      %17 = dma.hbm_to_vmem [thread:$0]  %s0, 512, %s15, [#allocation3]
    $region5: #{tpu_custom_call.1} parent=1 // pred_fallthru
      _
    // Predicated region
    $region6: #{tpu_custom_call.1} parent=1 // pred_check
      _
    $region7: #{tpu_custom_call.1} parent=1 // pred_check_branch
      %19 = sbr.rel (0) target = $region9
    $region8: #{tpu_custom_call.1} parent=1 // pred_region
      %20 = dma.done [#allocation3], 512
    $region9: #{tpu_custom_call.1} parent=1 // pred_fallthru
      _
    %v21 = vld [vmem:[#allocation2] sm:$0xff]
    %v22 = vld [vmem:[#allocation2 + $0x8] sm:$0xff]
    %v23 = vld [vmem:[#allocation2 + $0x10] sm:$0xff]
    %v24 = vld [vmem:[#allocation2 + $0x18] sm:$0xff]
    %v25 = vmul.f32 %v21, 30.0
    %v26 = vmul.f32 %v22, 30.0
    %v27 = vmul.f32 %v23, 30.0
    %v28 = vmul.f32 %v24, 30.0
    %v29 = vand.u32 2147483647, %v25
    %vm30 = vcmp.le.f32.partialorder %v29, 0.7853982
    %vm31 = vcmp.lt.s32.totalorder %v25, 0
    %v32 = vand.u32 %v25, 2139095040
    %v33 = vshrl.u32 %v32, 23
    %v34 = vsub.s32 %v33, 127
    %v35 = vand.u32 2147483647, %v25
    %v36 = vand.u32 %v35, 8388607
    %v37 = vor.u32 %v36, 8388608
    %v38 = vsub.s32 0, %v37
    %v39 = vadd.s32 %v34, 1
    %vm40 = vcmp.gt.s32.totalorder %v39, 0
    %v41 = vsel %vm40, %v39, 0
    %v42 = vshrl.u32 %v41, 5
    %v43 = vand.u32 %v41, 31
    %v44 = vsub.s32 32, %v43
    %v45 = vshrl.u32 683565275, %v44
    %v46 = vshll.u32 683565275, %v43
    %v47 = vshrl.u32 2475754826, %v44
    %v48 = vor.u32 %v46, %v47
    %v49 = vshll.u32 2475754826, %v43
    %v50 = vshrl.u32 2131351028, %v44
    %v51 = vor.u32 %v49, %v50
    %v52 = vshll.u32 2131351028, %v43
    %v53 = vshrl.u32 2102212464, %v44
    %v54 = vor.u32 %v52, %v53
    %v55 = vshll.u32 2102212464, %v43
    %v56 = vshrl.u32 920167782, %v44
    %v57 = vor.u32 %v55, %v56
    %v58 = vshll.u32 920167782, %v43
    %v59 = vshrl.u32 1326507024, %v44
    %v60 = vor.u32 %v58, %v59
    %vm61 = vcmp.lt.s32.totalorder %v42, 1
    %vm62 = vcmp.lt.s32.totalorder %v42, 2
    %vm63 = vcmp.lt.s32.totalorder %v42, 3
    %vm64 = vcmp.lt.s32.totalorder %v42, 4
    %v65 = vsel %vm61, %v45, %v48
    %v66 = vsel %vm64, %v54, 2102212464
    %v67 = vsel %vm63, %v51, %v66
    %v68 = vsel %vm62, %v65, %v67
    %v69 = vsel %vm61, %v48, %v51
    %v70 = vsel %vm64, %v57, 920167782
    %v71 = vsel %vm63, %v54, %v70
    %v72 = vsel %vm62, %v69, %v71
    %v73 = vsel %vm61, %v51, %v54
    %v74 = vsel %vm64, %v60, 1326507024
    %v75 = vsel %vm63, %v57, %v74
    %v76 = vsel %vm62, %v73, %v75
    %v77 = vshll.u32 %v37, 8
    %v78 = vmul.u32.u64.compose %v77, %v76
    %v79 = vextract.low.u32 %v78
    %v80 = vextract.high.u32 %v78
    %v81 = vmul.u32.u64.compose %v77, %v72
    %v82 = vextract.low.u32 %v81
    %v83 = vextract.high.u32 %v81
    %v84 = vmul.u32 %v77, %v68
    %v85 = vadd.s32 %v80, %v82
    %vm86 = vc.u32 %v80, %v82
    %v87 = vadd.s32 %v83, 1
    %v88 = vsel %vm86, %v87, %v83
    %v89 = vadd.s32 %v84, %v88
    %v90 = vadd.s32 %v89, 536870912
    %v91 = vshrl.u32 %v90, 30
    %v92 = vshll.u32 %v91, 30
    %v93 = vsub.s32 %v89, %v92
    %vm94 = vcmp.lt.s32.totalorder %v93, 0
    %v95 = vsub.s32 0, %v93
    %v96 = vsel %vm94, %v95, %v93
    %v97 = vclz %v96
    %v98 = vsub.s32 %v97, 2
    %vm99 = vcmp.gt.s32.totalorder 0, %v98
    %v100 = vsel %vm99, 0, %v98
    %v101 = vsub.s32 32, %v100
    %v102 = vshll.u32 %v93, %v100
    %v103 = vshrl.u32 %v85, %v101
    %v104 = vor.u32 %v102, %v103
    %v105 = vsub.s32 4294967266, %v100
    %v106 = vadd.s32 %v105, 127
    %v107 = vshll.u32 %v106, 23
    %v108 = vor.u32 4788187, %v107
    %v109 = vand.u32 2147483647, %v108
    %v111 = vcvt.s32.f32 %v104
    %v112 = vmul.f32 %v111, %v109
    %v113 = vxor.u32 %v112, 2147483648
    %v114 = vsel %vm31, %v113, %v112
    %v115 = vsub.s32 4, %v91
    %v116 = vsel %vm31, %v115, %v91
    %v117 = vsel %vm30, %v25, %v114
    %v118 = vsel %vm30, 0, %v116
    %v119 = vcosq.f32.pop %v117
    %v120 = vsinq.f32.pop %v117
    %vm121 = vweird.f32 %v25
    %v122 = vadd.s32 %v118, 3
    %v123 = vand.u32 %v122, 3
    %vm124 = vcmp.lt.s32.totalorder %v123, 2
    %vm125 = vcmp.eq.s32.totalorder %v123, 0
    %v126 = vxor.u32 %v120, 2147483648
    %v127 = vsel %vm125, %v119, %v126
    %vm128 = vcmp.eq.s32.totalorder %v123, 2
    %v129 = vxor.u32 %v119, 2147483648
    %v130 = vsel %vm128, %v129, %v120
    %v131 = vsel %vm124, %v127, %v130
    %v132 = vsel %vm121, nan, %v131
    %v133 = vand.u32 2147483647, %v26
    %vm134 = vcmp.le.f32.partialorder %v133, 0.7853982
    %vm135 = vcmp.lt.s32.totalorder %v26, 0
    %v136 = vand.u32 %v26, 2139095040
    %v137 = vshrl.u32 %v136, 23
    %v138 = vsub.s32 %v137, 127
    %v139 = vand.u32 2147483647, %v26
    %v140 = vand.u32 %v139, 8388607
    %v141 = vor.u32 %v140, 8388608
    %v142 = vsub.s32 0, %v141
    %v143 = vadd.s32 %v138, 1
    %vm144 = vcmp.gt.s32.totalorder %v143, 0
    %v145 = vsel %vm144, %v143, 0
    %v146 = vshrl.u32 %v145, 5
    %v147 = vand.u32 %v145, 31
    %v148 = vsub.s32 32, %v147
    %v149 = vshrl.u32 683565275, %v148
    %v150 = vshll.u32 683565275, %v147
    %v151 = vshrl.u32 2475754826, %v148
    %v152 = vor.u32 %v150, %v151
    %v153 = vshll.u32 2475754826, %v147
    %v154 = vshrl.u32 2131351028, %v148
    %v155 = vor.u32 %v153, %v154
    %v156 = vshll.u32 2131351028, %v147
    %v157 = vshrl.u32 2102212464, %v148
    %v158 = vor.u32 %v156, %v157
    %v159 = vshll.u32 2102212464, %v147
    %v160 = vshrl.u32 920167782, %v148
    %v161 = vor.u32 %v159, %v160
    %v162 = vshll.u32 920167782, %v147
    %v163 = vshrl.u32 1326507024, %v148
    %v164 = vor.u32 %v162, %v163
    %vm165 = vcmp.lt.s32.totalorder %v146, 1
    %vm166 = vcmp.lt.s32.totalorder %v146, 2
    %vm167 = vcmp.lt.s32.totalorder %v146, 3
    %vm168 = vcmp.lt.s32.totalorder %v146, 4
    %v169 = vsel %vm165, %v149, %v152
    %v170 = vsel %vm168, %v158, 2102212464
    %v171 = vsel %vm167, %v155, %v170
    %v172 = vsel %vm166, %v169, %v171
    %v173 = vsel %vm165, %v152, %v155
    %v174 = vsel %vm168, %v161, 920167782
    %v175 = vsel %vm167, %v158, %v174
    %v176 = vsel %vm166, %v173, %v175
    %v177 = vsel %vm165, %v155, %v158
    %v178 = vsel %vm168, %v164, 1326507024
    %v179 = vsel %vm167, %v161, %v178
    %v180 = vsel %vm166, %v177, %v179
    %v181 = vshll.u32 %v141, 8
    %v182 = vmul.u32.u64.compose %v181, %v180
    %v183 = vextract.low.u32 %v182
    %v184 = vextract.high.u32 %v182
    %v185 = vmul.u32.u64.compose %v181, %v176
    %v186 = vextract.low.u32 %v185
    %v187 = vextract.high.u32 %v185
    %v188 = vmul.u32 %v181, %v172
    %v189 = vadd.s32 %v184, %v186
    %vm190 = vc.u32 %v184, %v186
    %v191 = vadd.s32 %v187, 1
    %v192 = vsel %vm190, %v191, %v187
    %v193 = vadd.s32 %v188, %v192
    %v194 = vadd.s32 %v193, 536870912
    %v195 = vshrl.u32 %v194, 30
    %v196 = vshll.u32 %v195, 30
    %v197 = vsub.s32 %v193, %v196
    %vm198 = vcmp.lt.s32.totalorder %v197, 0
    %v199 = vsub.s32 0, %v197
    %v200 = vsel %vm198, %v199, %v197
    %v201 = vclz %v200
    %v202 = vsub.s32 %v201, 2
    %vm203 = vcmp.gt.s32.totalorder 0, %v202
    %v204 = vsel %vm203, 0, %v202
    %v205 = vsub.s32 32, %v204
    %v206 = vshll.u32 %v197, %v204
    %v207 = vshrl.u32 %v189, %v205
    %v208 = vor.u32 %v206, %v207
    %v209 = vsub.s32 4294967266, %v204
    %v210 = vadd.s32 %v209, 127
    %v211 = vshll.u32 %v210, 23
    %v212 = vor.u32 4788187, %v211
    %v213 = vand.u32 2147483647, %v212
    %v215 = vcvt.s32.f32 %v208
    %v216 = vmul.f32 %v215, %v213
    %v217 = vxor.u32 %v216, 2147483648
    %v218 = vsel %vm135, %v217, %v216
    %v219 = vsub.s32 4, %v195
    %v220 = vsel %vm135, %v219, %v195
    %v221 = vsel %vm134, %v26, %v218
    %v222 = vsel %vm134, 0, %v220
    %v223 = vcosq.f32.pop %v221
    %v224 = vsinq.f32.pop %v221
    %vm225 = vweird.f32 %v26
    %v226 = vadd.s32 %v222, 3
    %v227 = vand.u32 %v226, 3
    %vm228 = vcmp.lt.s32.totalorder %v227, 2
    %vm229 = vcmp.eq.s32.totalorder %v227, 0
    %v230 = vxor.u32 %v224, 2147483648
    %v231 = vsel %vm229, %v223, %v230
    %vm232 = vcmp.eq.s32.totalorder %v227, 2
    %v233 = vxor.u32 %v223, 2147483648
    %v234 = vsel %vm232, %v233, %v224
    %v235 = vsel %vm228, %v231, %v234
    %v236 = vsel %vm225, nan, %v235
    %v237 = vand.u32 2147483647, %v27
    %vm238 = vcmp.le.f32.partialorder %v237, 0.7853982
    %vm239 = vcmp.lt.s32.totalorder %v27, 0
    %v240 = vand.u32 %v27, 2139095040
    %v241 = vshrl.u32 %v240, 23
    %v242 = vsub.s32 %v241, 127
    %v243 = vand.u32 2147483647, %v27
    %v244 = vand.u32 %v243, 8388607
    %v245 = vor.u32 %v244, 8388608
    %v246 = vsub.s32 0, %v245
    %v247 = vadd.s32 %v242, 1
    %vm248 = vcmp.gt.s32.totalorder %v247, 0
    %v249 = vsel %vm248, %v247, 0
    %v250 = vshrl.u32 %v249, 5
    %v251 = vand.u32 %v249, 31
    %v252 = vsub.s32 32, %v251
    %v253 = vshrl.u32 683565275, %v252
    %v254 = vshll.u32 683565275, %v251
    %v255 = vshrl.u32 2475754826, %v252
    %v256 = vor.u32 %v254, %v255
    %v257 = vshll.u32 2475754826, %v251
    %v258 = vshrl.u32 2131351028, %v252
    %v259 = vor.u32 %v257, %v258
    %v260 = vshll.u32 2131351028, %v251
    %v261 = vshrl.u32 2102212464, %v252
    %v262 = vor.u32 %v260, %v261
    %v263 = vshll.u32 2102212464, %v251
    %v264 = vshrl.u32 920167782, %v252
    %v265 = vor.u32 %v263, %v264
    %v266 = vshll.u32 920167782, %v251
    %v267 = vshrl.u32 1326507024, %v252
    %v268 = vor.u32 %v266, %v267
    %vm269 = vcmp.lt.s32.totalorder %v250, 1
    %vm270 = vcmp.lt.s32.totalorder %v250, 2
    %vm271 = vcmp.lt.s32.totalorder %v250, 3
    %vm272 = vcmp.lt.s32.totalorder %v250, 4
    %v273 = vsel %vm269, %v253, %v256
    %v274 = vsel %vm272, %v262, 2102212464
    %v275 = vsel %vm271, %v259, %v274
    %v276 = vsel %vm270, %v273, %v275
    %v277 = vsel %vm269, %v256, %v259
    %v278 = vsel %vm272, %v265, 920167782
    %v279 = vsel %vm271, %v262, %v278
    %v280 = vsel %vm270, %v277, %v279
    %v281 = vsel %vm269, %v259, %v262
    %v282 = vsel %vm272, %v268, 1326507024
    %v283 = vsel %vm271, %v265, %v282
    %v284 = vsel %vm270, %v281, %v283
    %v285 = vshll.u32 %v245, 8
    %v286 = vmul.u32.u64.compose %v285, %v284
    %v287 = vextract.low.u32 %v286
    %v288 = vextract.high.u32 %v286
    %v289 = vmul.u32.u64.compose %v285, %v280
    %v290 = vextract.low.u32 %v289
    %v291 = vextract.high.u32 %v289
    %v292 = vmul.u32 %v285, %v276
    %v293 = vadd.s32 %v288, %v290
    %vm294 = vc.u32 %v288, %v290
    %v295 = vadd.s32 %v291, 1
    %v296 = vsel %vm294, %v295, %v291
    %v297 = vadd.s32 %v292, %v296
    %v298 = vadd.s32 %v297, 536870912
    %v299 = vshrl.u32 %v298, 30
    %v300 = vshll.u32 %v299, 30
    %v301 = vsub.s32 %v297, %v300
    %vm302 = vcmp.lt.s32.totalorder %v301, 0
    %v303 = vsub.s32 0, %v301
    %v304 = vsel %vm302, %v303, %v301
    %v305 = vclz %v304
    %v306 = vsub.s32 %v305, 2
    %vm307 = vcmp.gt.s32.totalorder 0, %v306
    %v308 = vsel %vm307, 0, %v306
    %v309 = vsub.s32 32, %v308
    %v310 = vshll.u32 %v301, %v308
    %v311 = vshrl.u32 %v293, %v309
    %v312 = vor.u32 %v310, %v311
    %v313 = vsub.s32 4294967266, %v308
    %v314 = vadd.s32 %v313, 127
    %v315 = vshll.u32 %v314, 23
    %v316 = vor.u32 4788187, %v315
    %v317 = vand.u32 2147483647, %v316
    %v319 = vcvt.s32.f32 %v312
    %v320 = vmul.f32 %v319, %v317
    %v321 = vxor.u32 %v320, 2147483648
    %v322 = vsel %vm239, %v321, %v320
    %v323 = vsub.s32 4, %v299
    %v324 = vsel %vm239, %v323, %v299
    %v325 = vsel %vm238, %v27, %v322
    %v326 = vsel %vm238, 0, %v324
    %v327 = vcosq.f32.pop %v325
    %v328 = vsinq.f32.pop %v325
    %vm329 = vweird.f32 %v27
    %v330 = vadd.s32 %v326, 3
    %v331 = vand.u32 %v330, 3
    %vm332 = vcmp.lt.s32.totalorder %v331, 2
    %vm333 = vcmp.eq.s32.totalorder %v331, 0
    %v334 = vxor.u32 %v328, 2147483648
    %v335 = vsel %vm333, %v327, %v334
    %vm336 = vcmp.eq.s32.totalorder %v331, 2
    %v337 = vxor.u32 %v327, 2147483648
    %v338 = vsel %vm336, %v337, %v328
    %v339 = vsel %vm332, %v335, %v338
    %v340 = vsel %vm329, nan, %v339
    %v341 = vand.u32 2147483647, %v28
    %vm342 = vcmp.le.f32.partialorder %v341, 0.7853982
    %vm343 = vcmp.lt.s32.totalorder %v28, 0
    %v344 = vand.u32 %v28, 2139095040
    %v345 = vshrl.u32 %v344, 23
    %v346 = vsub.s32 %v345, 127
    %v347 = vand.u32 2147483647, %v28
    %v348 = vand.u32 %v347, 8388607
    %v349 = vor.u32 %v348, 8388608
    %v350 = vsub.s32 0, %v349
    %v351 = vadd.s32 %v346, 1
    %vm352 = vcmp.gt.s32.totalorder %v351, 0
    %v353 = vsel %vm352, %v351, 0
    %v354 = vshrl.u32 %v353, 5
    %v355 = vand.u32 %v353, 31
    %v356 = vsub.s32 32, %v355
    %v357 = vshrl.u32 683565275, %v356
    %v358 = vshll.u32 683565275, %v355
    %v359 = vshrl.u32 2475754826, %v356
    %v360 = vor.u32 %v358, %v359
    %v361 = vshll.u32 2475754826, %v355
    %v362 = vshrl.u32 2131351028, %v356
    %v363 = vor.u32 %v361, %v362
    %v364 = vshll.u32 2131351028, %v355
    %v365 = vshrl.u32 2102212464, %v356
    %v366 = vor.u32 %v364, %v365
    %v367 = vshll.u32 2102212464, %v355
    %v368 = vshrl.u32 920167782, %v356
    %v369 = vor.u32 %v367, %v368
    %v370 = vshll.u32 920167782, %v355
    %v371 = vshrl.u32 1326507024, %v356
    %v372 = vor.u32 %v370, %v371
    %vm373 = vcmp.lt.s32.totalorder %v354, 1
    %vm374 = vcmp.lt.s32.totalorder %v354, 2
    %vm375 = vcmp.lt.s32.totalorder %v354, 3
    %vm376 = vcmp.lt.s32.totalorder %v354, 4
    %v377 = vsel %vm373, %v357, %v360
    %v378 = vsel %vm376, %v366, 2102212464
    %v379 = vsel %vm375, %v363, %v378
    %v380 = vsel %vm374, %v377, %v379
    %v381 = vsel %vm373, %v360, %v363
    %v382 = vsel %vm376, %v369, 920167782
    %v383 = vsel %vm375, %v366, %v382
    %v384 = vsel %vm374, %v381, %v383
    %v385 = vsel %vm373, %v363, %v366
    %v386 = vsel %vm376, %v372, 1326507024
    %v387 = vsel %vm375, %v369, %v386
    %v388 = vsel %vm374, %v385, %v387
    %v389 = vshll.u32 %v349, 8
    %v390 = vmul.u32.u64.compose %v389, %v388
    %v391 = vextract.low.u32 %v390
    %v392 = vextract.high.u32 %v390
    %v393 = vmul.u32.u64.compose %v389, %v384
    %v394 = vextract.low.u32 %v393
    %v395 = vextract.high.u32 %v393
    %v396 = vmul.u32 %v389, %v380
    %v397 = vadd.s32 %v392, %v394
    %vm398 = vc.u32 %v392, %v394
    %v399 = vadd.s32 %v395, 1
    %v400 = vsel %vm398, %v399, %v395
    %v401 = vadd.s32 %v396, %v400
    %v402 = vadd.s32 %v401, 536870912
    %v403 = vshrl.u32 %v402, 30
    %v404 = vshll.u32 %v403, 30
    %v405 = vsub.s32 %v401, %v404
    %vm406 = vcmp.lt.s32.totalorder %v405, 0
    %v407 = vsub.s32 0, %v405
    %v408 = vsel %vm406, %v407, %v405
    %v409 = vclz %v408
    %v410 = vsub.s32 %v409, 2
    %vm411 = vcmp.gt.s32.totalorder 0, %v410
    %v412 = vsel %vm411, 0, %v410
    %v413 = vsub.s32 32, %v412
    %v414 = vshll.u32 %v405, %v412
    %v415 = vshrl.u32 %v397, %v413
    %v416 = vor.u32 %v414, %v415
    %v417 = vsub.s32 4294967266, %v412
    %v418 = vadd.s32 %v417, 127
    %v419 = vshll.u32 %v418, 23
    %v420 = vor.u32 4788187, %v419
    %v421 = vand.u32 2147483647, %v420
    %v423 = vcvt.s32.f32 %v416
    %v424 = vmul.f32 %v423, %v421
    %v425 = vxor.u32 %v424, 2147483648
    %v426 = vsel %vm343, %v425, %v424
    %v427 = vsub.s32 4, %v403
    %v428 = vsel %vm343, %v427, %v403
    %v429 = vsel %vm342, %v28, %v426
    %v430 = vsel %vm342, 0, %v428
    %v431 = vcosq.f32.pop %v429
    %v432 = vsinq.f32.pop %v429
    %vm433 = vweird.f32 %v28
    %v434 = vadd.s32 %v430, 3
    %v435 = vand.u32 %v434, 3
    %vm436 = vcmp.lt.s32.totalorder %v435, 2
    %vm437 = vcmp.eq.s32.totalorder %v435, 0
    %v438 = vxor.u32 %v432, 2147483648
    %v439 = vsel %vm437, %v431, %v438
    %vm440 = vcmp.eq.s32.totalorder %v435, 2
    %v441 = vxor.u32 %v431, 2147483648
    %v442 = vsel %vm440, %v441, %v432
    %v443 = vsel %vm436, %v439, %v442
    %v444 = vsel %vm433, nan, %v443
    %445 = vst [vmem:[#allocation5] sm:$0xff] %v132
    %446 = vst [vmem:[#allocation5 + $0x8] sm:$0xff] %v236
    %447 = vst [vmem:[#allocation5 + $0x10] sm:$0xff] %v340
    %448 = vst [vmem:[#allocation5 + $0x18] sm:$0xff] %v444
    // Predicated region
    $region10: #{tpu_custom_call.1} parent=1 // pred_check
      _
    $region11: #{tpu_custom_call.1} parent=1 // pred_check_branch
      %450 = sbr.rel (0) target = $region13
    $region12: #{tpu_custom_call.1} parent=1 // pred_region
      %s452 = ssub.s32 512, 512
      %453 = vsyncadd [#allocation4], %s452
      %s455 = sshll.u32 [#allocation5], 4
      %s456 = int_to_ptr.vmem [resolvable:$true] %s455
      %458 = dma.vmem_to_hbm [thread:$0]  %s456, 512, %s1, [#allocation4]
    $region13: #{tpu_custom_call.1} parent=1 // pred_fallthru
      _
    // Predicated region
    $region14: #{tpu_custom_call.1} parent=1 // pred_check
      _
    $region15: #{tpu_custom_call.1} parent=1 // pred_check_branch
      %460 = sbr.rel (0) target = $region17
    $region16: #{tpu_custom_call.1} parent=1 // pred_region
      %461 = dma.done [#allocation4], 512
    $region17: #{tpu_custom_call.1} parent=1 // pred_fallthru
      _
    %462 = vsyncpa [#allocation3], 1
    %463 = vsyncpa [#allocation4], 1

</llo_original>
